<compile_context>
chip_gen: v7x
topology: tpu7x:2x2x1
jax: 0.10.0
libtpu: 0.0.40
codegen_flags: <defaults>
</compile_context>

<pallas_src>
import numpy as np
import jax
import jax.numpy as jnp
from jax.experimental import pallas as pl
from jax.experimental.pallas import tpu as pltpu

_LANE = 128
_SUB = 8
_VMEM_BUDGET = 8 * 1024 * 1024   # target for the double-buffered pipeline footprint


def _cdiv(a, b):
    return -(-a // b)


def _round_up(a, m):
    return _cdiv(a, m) * m


def _channel_pairs(nch, ch_mode):
    """Static per-batch (ref_channel, paired_channel) row table (order matches torch)."""
    if ch_mode == 'M':
        return [(0, j) for j in range(1, nch)]
    if ch_mode == 'MM':
        return [(i, j) for i in range(nch - 1) for j in range(i + 1, nch)]
    raise ValueError(f"unknown ch_mode {ch_mode!r}")


def _make_pair_copy_kernel(pairs):
    def kernel(x_ref, out_ref):
        # x_ref  : (1, nch, s_tile, 128)        -- all channels of one batch, one payload tile
        # out_ref: (rows_per_batch, 2, s_tile, 128)
        # Statically unrolled gather/broadcast: every statement moves one dense
        # (s_tile, 128) slab (full (8,128) vreg tiles, unmasked stores).  The
        # reference channel is read from HBM once per (batch, tile) and
        # broadcast to its output rows here, in VMEM.
        for r, (i, j) in enumerate(pairs):
            out_ref[r, 0, :, :] = x_ref[0, i, :, :]
            out_ref[r, 1, :, :] = x_ref[0, j, :, :]
    return kernel


def add_ch_to_batch_pallas(data, ch_mode):
    data = jnp.asarray(data).astype(jnp.complex64)
    nb, nch = int(data.shape[0]), int(data.shape[1])
    trailing = tuple(int(d) for d in data.shape[2:])
    P = int(np.prod(trailing)) if trailing else 1

    pairs = _channel_pairs(nch, ch_mode)
    rows_pb = len(pairs)
    nrows = nb * rows_pb
    if rows_pb == 0:                       # e.g. ch_mode='M' with nch == 1
        return jnp.zeros((0, 2) + trailing, jnp.complex64)

    # complex64 -> float32 with re/im interleaved on the lane axis: (nb, nch, 2P).
    # TODO(synk): lax.bitcast_convert_type rejects complex dtypes, so this
    # interleave (and the lax.complex recombine at the end) costs one explicit
    # XLA pass each instead of being a free reinterpretation.
    x = data.reshape(nb, nch, P)
    xf = jnp.stack([jnp.real(x), jnp.imag(x)], axis=-1).reshape(nb, nch, 2 * P)
    payload = 2 * P

    # (sublane, lane) tiling: lane dim fixed at 128 (unmasked, lane-dense stores),
    # sublane tile a multiple of 8 (dense vregs), sized so the double-buffered
    # in+out pipeline footprint stays under the scoped-VMEM budget everywhere.
    set_bytes_per_sub = (nch + 2 * rows_pb) * _LANE * 4         # one buffer set
    max_tile_sub = max(_SUB, (_VMEM_BUDGET // (2 * set_bytes_per_sub)) // _SUB * _SUB)
    s_needed = _cdiv(payload, _LANE)
    if s_needed <= max_tile_sub:
        n_tiles, s_tile = 1, _round_up(s_needed, _SUB)
    else:
        n_tiles = _cdiv(s_needed, max_tile_sub)
        s_tile = _round_up(_cdiv(s_needed, n_tiles), _SUB)
    S = n_tiles * s_tile

    pad = S * _LANE - payload
    if pad:
        xf = jnp.pad(xf, ((0, 0), (0, 0), (0, pad)))
    xf = xf.reshape(nb, nch, S, _LANE)

    out_f = pl.pallas_call(
        _make_pair_copy_kernel(pairs),
        out_shape=jax.ShapeDtypeStruct((nrows, 2, S, _LANE), jnp.float32),
        grid_spec=pltpu.PrefetchScalarGridSpec(
            num_scalar_prefetch=0,
            grid=(nb, n_tiles),
            in_specs=[pl.BlockSpec((1, nch, s_tile, _LANE),
                                   lambda b, t: (b, 0, t, 0))],
            out_specs=pl.BlockSpec((rows_pb, 2, s_tile, _LANE),
                                   lambda b, t: (b, 0, t, 0)),
        ),
        compiler_params=pltpu.CompilerParams(
            # Both grid axes are independent; only affects multi-TC chips (v7x).
            dimension_semantics=("parallel", "parallel")),
    )(xf)

    # Strip lane padding, recombine interleaved re/im to complex64, restore dims.
    out_f = out_f.reshape(nrows, 2, S * _LANE)[:, :, :payload]
    out_f = out_f.reshape(nrows, 2, P, 2)
    out_c = jax.lax.complex(out_f[..., 0], out_f[..., 1])
    return out_c.reshape((nrows, 2) + trailing)


def add_ch_to_batch_ref(data, ch_mode):
    """NumPy reference mirroring the PyTorch module's forward exactly."""
    data = np.asarray(data)
    nb, nch = data.shape[0], data.shape[1]
    rest = data.shape[2:]
    if ch_mode == 'M':
        out = np.zeros((nb * (nch - 1), 2) + rest, np.complex64)
        for b in range(nb):
            st, ed = b * (nch - 1), (b + 1) * (nch - 1)
            out[st:ed, 0, ...] = np.broadcast_to(data[b, 0:1, ...], (nch - 1,) + rest)
            out[st:ed, 1, ...] = data[b, 1:nch, ...]
    elif ch_mode == 'MM':
        npair = (nch - 1) * nch // 2
        out = np.zeros((nb * npair, 2) + rest, np.complex64)
        for b in range(nb):
            for ch in range(nch - 1):
                st = b * npair + (2 * nch - 2 - ch + 1) * ch // 2
                ed = b * npair + (2 * nch - 2 - ch) * (ch + 1) // 2
                out[st:ed, 0, ...] = np.broadcast_to(data[b, ch:ch + 1, ...],
                                                     (nch - ch - 1,) + rest)
                out[st:ed, 1, ...] = data[b, ch + 1:, ...]
    else:
        raise ValueError(ch_mode)
    return out


if __name__ == "__main__":
    key = jax.random.PRNGKey(0)
    ok = True
    # (nb, nch, F, T): one lane-aligned payload, plus a ragged shape that
    # exercises the lane/sublane padding path.
    for shape in [(2, 4, 16, 16), (2, 3, 5, 7)]:
        k1, k2 = jax.random.split(jax.random.fold_in(key, shape[1]))
        re = jax.random.normal(k1, shape, dtype=jnp.float32)
        im = jax.random.normal(k2, shape, dtype=jnp.float32)
        data = (re + 1j * im).astype(jnp.complex64)
        for mode in ('M', 'MM'):
            out = jax.block_until_ready(add_ch_to_batch_pallas(data, mode))
            ref = add_ch_to_batch_ref(np.asarray(data), mode)
            assert out.shape == ref.shape, (mode, out.shape, ref.shape)
            ok &= np.allclose(np.asarray(out), ref, atol=0.0, rtol=0.0)

    assert ok
    print("KERNEL_OK")
</pallas_src>

<mosaic_0001>
module attributes {stable_mosaic.version = 11 : i64} {
  func.func @kernel(%arg0: i32, %arg1: i32, %arg2: memref<1x4x8x128xf32, #tpu.memory_space<vmem>>, %arg3: memref<3x2x8x128xf32, #tpu.memory_space<vmem>>) attributes {dimension_semantics = [#tpu.dimension_semantics<parallel>, #tpu.dimension_semantics<parallel>], iteration_bounds = array<i64: 2, 1>, scalar_prefetch = 0 : i64, scratch_operands = 0 : i64, tpu.core_type = #tpu.core_type<tc>, window_params = [{transform_indices = @transform_0, window_bounds = array<i64: 1, 4, 8, 128>}, {transform_indices = @transform_1, window_bounds = array<i64: 3, 2, 8, 128>}]} {
    %c0 = arith.constant 0 : index
    %c0_0 = arith.constant 0 : index
    %c0_1 = arith.constant 0 : index
    %c0_2 = arith.constant 0 : index
    %0 = vector.load %arg2[%c0, %c0_0, %c0_1, %c0_2] : memref<1x4x8x128xf32, #tpu.memory_space<vmem>>, vector<1x1x8x128xf32>
    %1 = vector.shape_cast %0 : vector<1x1x8x128xf32> to vector<8x128xf32>
    %c0_3 = arith.constant 0 : index
    %c0_4 = arith.constant 0 : index
    %c0_5 = arith.constant 0 : index
    %c0_6 = arith.constant 0 : index
    %2 = vector.load %arg3[%c0_3, %c0_4, %c0_5, %c0_6] : memref<3x2x8x128xf32, #tpu.memory_space<vmem>>, vector<1x1x8x128xf32>
    %3 = vector.shape_cast %2 : vector<1x1x8x128xf32> to vector<8x128xf32>
    %4 = vector.shape_cast %1 : vector<8x128xf32> to vector<1x1x8x128xf32>
    tpu.vector_store %arg3[%c0_3, %c0_4, %c0_5, %c0_6], %4 {strides = array<i32>} : memref<3x2x8x128xf32, #tpu.memory_space<vmem>>, vector<1x1x8x128xf32>,
    %c0_7 = arith.constant 0 : index
    %c1 = arith.constant 1 : index
    %c0_8 = arith.constant 0 : index
    %c0_9 = arith.constant 0 : index
    %5 = vector.load %arg2[%c0_7, %c1, %c0_8, %c0_9] : memref<1x4x8x128xf32, #tpu.memory_space<vmem>>, vector<1x1x8x128xf32>
    %6 = vector.shape_cast %5 : vector<1x1x8x128xf32> to vector<8x128xf32>
    %c0_10 = arith.constant 0 : index
    %c1_11 = arith.constant 1 : index
    %c0_12 = arith.constant 0 : index
    %c0_13 = arith.constant 0 : index
    %7 = vector.load %arg3[%c0_10, %c1_11, %c0_12, %c0_13] : memref<3x2x8x128xf32, #tpu.memory_space<vmem>>, vector<1x1x8x128xf32>
    %8 = vector.shape_cast %7 : vector<1x1x8x128xf32> to vector<8x128xf32>
    %9 = vector.shape_cast %6 : vector<8x128xf32> to vector<1x1x8x128xf32>
    tpu.vector_store %arg3[%c0_10, %c1_11, %c0_12, %c0_13], %9 {strides = array<i32>} : memref<3x2x8x128xf32, #tpu.memory_space<vmem>>, vector<1x1x8x128xf32>,
    %c0_14 = arith.constant 0 : index
    %c0_15 = arith.constant 0 : index
    %c0_16 = arith.constant 0 : index
    %c0_17 = arith.constant 0 : index
    %10 = vector.load %arg2[%c0_14, %c0_15, %c0_16, %c0_17] : memref<1x4x8x128xf32, #tpu.memory_space<vmem>>, vector<1x1x8x128xf32>
    %11 = vector.shape_cast %10 : vector<1x1x8x128xf32> to vector<8x128xf32>
    %c1_18 = arith.constant 1 : index
    %c0_19 = arith.constant 0 : index
    %c0_20 = arith.constant 0 : index
    %c0_21 = arith.constant 0 : index
    %12 = vector.load %arg3[%c1_18, %c0_19, %c0_20, %c0_21] : memref<3x2x8x128xf32, #tpu.memory_space<vmem>>, vector<1x1x8x128xf32>
    %13 = vector.shape_cast %12 : vector<1x1x8x128xf32> to vector<8x128xf32>
    %14 = vector.shape_cast %11 : vector<8x128xf32> to vector<1x1x8x128xf32>
    tpu.vector_store %arg3[%c1_18, %c0_19, %c0_20, %c0_21], %14 {strides = array<i32>} : memref<3x2x8x128xf32, #tpu.memory_space<vmem>>, vector<1x1x8x128xf32>,
    %c0_22 = arith.constant 0 : index
    %c2 = arith.constant 2 : index
    %c0_23 = arith.constant 0 : index
    %c0_24 = arith.constant 0 : index
    %15 = vector.load %arg2[%c0_22, %c2, %c0_23, %c0_24] : memref<1x4x8x128xf32, #tpu.memory_space<vmem>>, vector<1x1x8x128xf32>
    %16 = vector.shape_cast %15 : vector<1x1x8x128xf32> to vector<8x128xf32>
    %c1_25 = arith.constant 1 : index
    %c1_26 = arith.constant 1 : index
    %c0_27 = arith.constant 0 : index
    %c0_28 = arith.constant 0 : index
    %17 = vector.load %arg3[%c1_25, %c1_26, %c0_27, %c0_28] : memref<3x2x8x128xf32, #tpu.memory_space<vmem>>, vector<1x1x8x128xf32>
    %18 = vector.shape_cast %17 : vector<1x1x8x128xf32> to vector<8x128xf32>
    %19 = vector.shape_cast %16 : vector<8x128xf32> to vector<1x1x8x128xf32>
    tpu.vector_store %arg3[%c1_25, %c1_26, %c0_27, %c0_28], %19 {strides = array<i32>} : memref<3x2x8x128xf32, #tpu.memory_space<vmem>>, vector<1x1x8x128xf32>,
    %c0_29 = arith.constant 0 : index
    %c0_30 = arith.constant 0 : index
    %c0_31 = arith.constant 0 : index
    %c0_32 = arith.constant 0 : index
    %20 = vector.load %arg2[%c0_29, %c0_30, %c0_31, %c0_32] : memref<1x4x8x128xf32, #tpu.memory_space<vmem>>, vector<1x1x8x128xf32>
    %21 = vector.shape_cast %20 : vector<1x1x8x128xf32> to vector<8x128xf32>
    %c2_33 = arith.constant 2 : index
    %c0_34 = arith.constant 0 : index
    %c0_35 = arith.constant 0 : index
    %c0_36 = arith.constant 0 : index
    %22 = vector.load %arg3[%c2_33, %c0_34, %c0_35, %c0_36] : memref<3x2x8x128xf32, #tpu.memory_space<vmem>>, vector<1x1x8x128xf32>
    %23 = vector.shape_cast %22 : vector<1x1x8x128xf32> to vector<8x128xf32>
    %24 = vector.shape_cast %21 : vector<8x128xf32> to vector<1x1x8x128xf32>
    tpu.vector_store %arg3[%c2_33, %c0_34, %c0_35, %c0_36], %24 {strides = array<i32>} : memref<3x2x8x128xf32, #tpu.memory_space<vmem>>, vector<1x1x8x128xf32>,
    %c0_37 = arith.constant 0 : index
    %c3 = arith.constant 3 : index
    %c0_38 = arith.constant 0 : index
    %c0_39 = arith.constant 0 : index
    %25 = vector.load %arg2[%c0_37, %c3, %c0_38, %c0_39] : memref<1x4x8x128xf32, #tpu.memory_space<vmem>>, vector<1x1x8x128xf32>
    %26 = vector.shape_cast %25 : vector<1x1x8x128xf32> to vector<8x128xf32>
    %c2_40 = arith.constant 2 : index
    %c1_41 = arith.constant 1 : index
    %c0_42 = arith.constant 0 : index
    %c0_43 = arith.constant 0 : index
    %27 = vector.load %arg3[%c2_40, %c1_41, %c0_42, %c0_43] : memref<3x2x8x128xf32, #tpu.memory_space<vmem>>, vector<1x1x8x128xf32>
    %28 = vector.shape_cast %27 : vector<1x1x8x128xf32> to vector<8x128xf32>
    %29 = vector.shape_cast %26 : vector<8x128xf32> to vector<1x1x8x128xf32>
    tpu.vector_store %arg3[%c2_40, %c1_41, %c0_42, %c0_43], %29 {strides = array<i32>} : memref<3x2x8x128xf32, #tpu.memory_space<vmem>>, vector<1x1x8x128xf32>,
    return
  }
  func.func @transform_0(%arg0: i32, %arg1: i32) -> (i32, i32, i32, i32) {
    %c0_i32 = arith.constant 0 : i32
    %c0_i32_0 = arith.constant 0 : i32
    %c0_i32_1 = arith.constant 0 : i32
    return %arg0, %c0_i32, %arg1, %c0_i32_0 : i32, i32, i32, i32
  }
  func.func @transform_1(%arg0: i32, %arg1: i32) -> (i32, i32, i32, i32) {
    %c0_i32 = arith.constant 0 : i32
    %c0_i32_0 = arith.constant 0 : i32
    %c0_i32_1 = arith.constant 0 : i32
    return %arg0, %c0_i32, %arg1, %c0_i32_0 : i32, i32, i32, i32
  }
}

</mosaic_0001>

<llo_original>
// kernel: tpu_custom_call.1
$region0: #{tpu_custom_call.1}
  #allocation0 [shape = 'u32[]', space=smem, size = 0x4, offset = 0x4, fixed_abs, tag = 'smem constant byte address 0x4 - core index']
  #allocation1 [shape = 'u32[144,128]{1,0:T(1,128)}', space=vmem, size = 0x12000, scoped, tag = 'internal scratch']
  %s0 = inlined_call_operand.hbm [shape: f32[2,4,8,128], index: 0, kind: input, shape index: {}]
  %s1 = inlined_call_operand.hbm [shape: f32[6,2,8,128], index: 1, kind: output, shape index: {}]
  %s2 = sld [smem:[#allocation0]]
  $region41: #{tpu_custom_call.1} parent=0
    _
  %s4 = ssub.s32 1, %s2
  %s5 = scalar_select 0, %s4, %s2
  $region1: #{tpu_custom_call.1} parent=0
    #allocation2 [shape = 'u8[32768]{0}', space=vmem, size = 0x8000, scoped, tag = 'input window, operand 0']
    #allocation3 [shape = 's32[2]{0}', space=sflag, size = 0x8, scoped, tag = 'scoped memory for tpu_custom_call.1']
    #allocation4 [shape = 's32[2]{0}', space=sflag, size = 0x8, scoped, tag = 'scoped memory for tpu_custom_call.1']
    #allocation5 [shape = 'u8[49152]{0}', space=vmem, size = 0xc000, scoped, tag = 'output window, operand 0']
    %6 = vsyncpa [#allocation3], 0
    %s7 = scalar_lea.sflag [#allocation3], 1
    %8 = vsyncpa %s7, 0
    %9 = vsyncpa [#allocation4], 0
    %s10 = scalar_lea.sflag [#allocation4], 1
    %11 = vsyncpa %s10, 0
    loop: start=0, step=1, limit=4
    $region2: #{tpu_custom_call.1} parent=1 // loop_pre_header
      _
    $region3: #{tpu_custom_call.1} parent=1 // loop_header
      %s13 = sphi 0, %s17
      %p14 = scmp.ge.s32.totalorder %s13, 4
      %s20 = sphi 0, %s32
      %s21 = sphi 0, %s28
      %s22 = sphi 0, %s20
      %s23 = sphi 0, %s21
      %s24 = sphi 0, %s22
      %s25 = sphi 0, %s23
      %s37 = sphi 0, %s39
      %s40 = sphi 0, %s37
      %s41 = sphi 0, %s40
      %s57 = sphi 0, %s41
      %s65 = sphi 0, %s67
      %s68 = sphi 0, %s65
      %s69 = sphi 0, %s68
      %s85 = sphi 0, %s69
    $region4: #{tpu_custom_call.1} parent=1 // loop_header_branch
      %16 = sbr.rel (%p14) target = $region8
    $region5: #{tpu_custom_call.1} parent=1 // loop_body
      %s18 = ssub.s32 %s13, 1
      %s19 = ssub.s32 %s13, 2
      %s26 = sadd.s32 1, %s21
      %p27 = scmp.ge.s32.totalorder %s26, 1
      %s28 = scalar_select %p27, 0, %s26
      %s29 = sadd.s32 1, %s20
      %s30 = scalar_select %p27, %s29, %s20
      %p31 = scmp.ge.s32.totalorder %s30, 2
      %s32 = scalar_select %p31, 0, %s30
      %s33 = ssub.s32 %s20, %s32
      %s34 = ssub.s32 %s21, %s28
      %s35 = sor.u32 %s33, %s34
      %p36 = scmp.eq.s32.totalorder %s35, 0
      %s38 = sadd.s32 %s37, 1
      %s39 = scalar_select %p36, %s37, %s38
      %p42 = pneg %p36
      %p43 = scmp.eq.s32.totalorder %s13, 1
      %p44 = por %p42, %p43
      %p45 = scmp.ne.s32.totalorder %s37, %s40
      %p46 = scmp.eq.s32.totalorder %s13, 0
      %p47 = por %p45, %p46
      %p48 = scmp.ne.s32.totalorder %s37, %s40
      %p49 = scmp.eq.s32.totalorder %s18, 1
      %p50 = por %p48, %p49
      %p51 = scmp.ne.s32.totalorder %s40, %s41
      %p52 = scmp.eq.s32.totalorder %s18, 0
      %p53 = por %p51, %p52
      %p54 = scmp.ne.s32.totalorder %s40, %s41
      %p55 = scmp.eq.s32.totalorder %s19, 1
      %p56 = por %p54, %p55
      %p58 = scmp.ne.s32.totalorder %s41, %s57
      %p59 = scmp.eq.s32.totalorder %s19, 0
      %p60 = por %p58, %p59
      %s61 = ssub.s32 %s20, %s32
      %s62 = ssub.s32 %s21, %s28
      %s63 = sor.u32 %s61, %s62
      %p64 = scmp.eq.s32.totalorder %s63, 0
      %s66 = sadd.s32 %s65, 1
      %s67 = scalar_select %p64, %s65, %s66
      %p70 = pneg %p64
      %p71 = scmp.eq.s32.totalorder %s13, 1
      %p72 = por %p70, %p71
      %p73 = scmp.ne.s32.totalorder %s65, %s68
      %p74 = scmp.eq.s32.totalorder %s13, 0
      %p75 = por %p73, %p74
      %p76 = scmp.ne.s32.totalorder %s65, %s68
      %p77 = scmp.eq.s32.totalorder %s18, 1
      %p78 = por %p76, %p77
      %p79 = scmp.ne.s32.totalorder %s68, %s69
      %p80 = scmp.eq.s32.totalorder %s18, 0
      %p81 = por %p79, %p80
      %p82 = scmp.ne.s32.totalorder %s68, %s69
      %p83 = scmp.eq.s32.totalorder %s19, 1
      %p84 = por %p82, %p83
      %p86 = scmp.ne.s32.totalorder %s69, %s85
      %p87 = scmp.eq.s32.totalorder %s19, 0
      %p88 = por %p86, %p87
      %p89 = scmp.le.s32.totalorder 1, %s13
      %p90 = scmp.lt.s32.totalorder %s13, 3
      %p91 = pnand %p89, %p90
      %p92 = pneg %p91
      // Predicated region
      $region9: #{tpu_custom_call.1} parent=5 // pred_check
        _
      $region10: #{tpu_custom_call.1} parent=5 // pred_check_branch
        %94 = sbr.rel (%p91) target = $region12
      $region11: #{tpu_custom_call.1} parent=5 // pred_region
        %s95 = ssub.s32 %s13, 1
      $region12: #{tpu_custom_call.1} parent=5 // pred_fallthru
        _
      %p96 = scmp.lt.s32.totalorder %s13, 2
      // Predicated region
      $region13: #{tpu_custom_call.1} parent=5 // pred_check
        %p97 = pneg %p96
      $region14: #{tpu_custom_call.1} parent=5 // pred_check_branch
        %99 = sbr.rel (%p97) target = $region16
      $region15: #{tpu_custom_call.1} parent=5 // pred_region
        // Predicated region
        $region17: #{tpu_custom_call.1} parent=15 // pred_check
          %p100 = pneg %p47
        $region18: #{tpu_custom_call.1} parent=15 // pred_check_branch
          %102 = sbr.rel (%p100) target = $region20
        $region19: #{tpu_custom_call.1} parent=15 // pred_region
          %s103 = sand.u32 %s37, 1
          %s104 = scalar_lea.sflag [#allocation3], %s103
          %s105 = sand.u32 %s37, 1
          %s106 = smul.addr %s105, 32
          %s107 = scalar_lea.vmem [#allocation2], %s106
          %s109 = ssub.s32 512, 512
          %110 = vsyncadd %s104, %s109
          %s111 = smul.addr %s20, 4
          %s112 = sadd.s32 %s21, %s111
          %s113 = smul.addr %s112, 128
          %s114 = scalar_lea.hbm %s0, %s113
          %s115 = sshll.u32 %s107, 4
          %s116 = int_to_ptr.vmem [resolvable:$true] %s115
          %121 = dma.hbm_to_vmem [thread:$0]  %s114, 512, %s116, %s104, 128, 128, 8
        $region20: #{tpu_custom_call.1} parent=15 // pred_fallthru
          _
      $region16: #{tpu_custom_call.1} parent=5 // pred_fallthru
        _
      %p122 = scmp.le.s32.totalorder 1, %s13
      %p123 = scmp.lt.s32.totalorder %s13, 3
      %p124 = pnand %p122, %p123
      %p125 = pneg %p124
      // Predicated region
      $region21: #{tpu_custom_call.1} parent=5 // pred_check
        _
      $region22: #{tpu_custom_call.1} parent=5 // pred_check_branch
        %127 = sbr.rel (%p124) target = $region24
      $region23: #{tpu_custom_call.1} parent=5 // pred_region
        %s128 = ssub.s32 %s13, 1
        %s129 = sand.u32 %s40, 1
        %s130 = scalar_lea.sflag [#allocation3], %s129
        %s131 = sand.u32 %s40, 1
        %s132 = smul.addr %s131, 32
        %s133 = scalar_lea.vmem [#allocation2], %s132
        // Predicated region
        $region25: #{tpu_custom_call.1} parent=23 // pred_check
          %p134 = pneg %p53
        $region26: #{tpu_custom_call.1} parent=23 // pred_check_branch
          %136 = sbr.rel (%p134) target = $region28
        $region27: #{tpu_custom_call.1} parent=23 // pred_region
          %137 = dma.done %s130, 512
        $region28: #{tpu_custom_call.1} parent=23 // pred_fallthru
          _
        %s138 = sand.u32 %s40, 1
        %s139 = scalar_lea.sflag [#allocation3], %s138
        %s140 = sand.u32 %s40, 1
        %s141 = smul.addr %s140, 32
        %s142 = scalar_lea.vmem [#allocation2], %s141
        %p143 = pneg %p53
        %p144 = pneg %p50
        %p145 = pneg %p81
        %p146 = pneg %p78
        %s147 = sand.u32 %s68, 1
        %s148 = scalar_lea.sflag [#allocation4], %s147
        %s149 = sand.u32 %s68, 1
        %s150 = smul.addr %s149, 48
        %s151 = scalar_lea.vmem [#allocation5], %s150
        %s152 = smul.u32 3, %s22
        %v153 = vld [vmem:[%s133] sm:$0xff]
        %154 = vst [vmem:[%s151] sm:$0xff] %v153
        %s155 = scalar_lea.vmem %s133, 8 [#allocation2]
        %v156 = vld [vmem:[%s155] sm:$0xff]
        %s157 = scalar_lea.vmem %s151, 8 [#allocation5]
        %158 = vst [vmem:[%s157] sm:$0xff] %v156
        %v159 = vld [vmem:[%s133] sm:$0xff]
        %s160 = scalar_lea.vmem %s151, 16 [#allocation5]
        %161 = vst [vmem:[%s160] sm:$0xff] %v159
        %s162 = scalar_lea.vmem %s133, 16 [#allocation2]
        %v163 = vld [vmem:[%s162] sm:$0xff]
        %s164 = scalar_lea.vmem %s151, 24 [#allocation5]
        %165 = vst [vmem:[%s164] sm:$0xff] %v163
        %v166 = vld [vmem:[%s133] sm:$0xff]
        %s167 = scalar_lea.vmem %s151, 32 [#allocation5]
        %168 = vst [vmem:[%s167] sm:$0xff] %v166
        %s169 = scalar_lea.vmem %s133, 24 [#allocation2]
        %v170 = vld [vmem:[%s169] sm:$0xff]
        %s171 = scalar_lea.vmem %s151, 40 [#allocation5]
        %172 = vst [vmem:[%s171] sm:$0xff] %v170
        %s173 = sand.u32 %s68, 1
        %s174 = scalar_lea.sflag [#allocation4], %s173
        %s175 = sand.u32 %s68, 1
        %s176 = smul.addr %s175, 48
        %s177 = scalar_lea.vmem [#allocation5], %s176
        // Predicated region
        $region29: #{tpu_custom_call.1} parent=23 // pred_check
          %p178 = pneg %p78
        $region30: #{tpu_custom_call.1} parent=23 // pred_check_branch
          %180 = sbr.rel (%p178) target = $region32
        $region31: #{tpu_custom_call.1} parent=23 // pred_region
          %s181 = smul.u32 3, %s22
          %s183 = ssub.s32 768, 768
          %184 = vsyncadd %s174, %s183
          %s185 = smul.addr %s181, 2
          %s186 = sadd.s32 %s23, %s185
          %s187 = smul.addr %s186, 128
          %s188 = scalar_lea.hbm %s1, %s187
          %s189 = sshll.u32 %s177, 4
          %s190 = int_to_ptr.vmem [resolvable:$true] %s189
          %195 = dma.vmem_to_hbm [thread:$0]  %s190, 768, %s188, %s174, 128, 128, 8
        $region32: #{tpu_custom_call.1} parent=23 // pred_fallthru
          _
      $region24: #{tpu_custom_call.1} parent=5 // pred_fallthru
        _
      %p196 = scmp.le.s32.totalorder 2, %s13
      // Predicated region
      $region33: #{tpu_custom_call.1} parent=5 // pred_check
        %p197 = pneg %p196
      $region34: #{tpu_custom_call.1} parent=5 // pred_check_branch
        %199 = sbr.rel (%p197) target = $region36
      $region35: #{tpu_custom_call.1} parent=5 // pred_region
        %s200 = ssub.s32 %s13, 2
        // Predicated region
        $region37: #{tpu_custom_call.1} parent=35 // pred_check
          %p201 = pneg %p84
        $region38: #{tpu_custom_call.1} parent=35 // pred_check_branch
          %203 = sbr.rel (%p201) target = $region40
        $region39: #{tpu_custom_call.1} parent=35 // pred_region
          %s204 = sand.u32 %s69, 1
          %s205 = scalar_lea.sflag [#allocation4], %s204
          %s206 = sand.u32 %s69, 1
          %s207 = smul.addr %s206, 48
          %s208 = scalar_lea.vmem [#allocation5], %s207
          %209 = dma.done %s205, 768
        $region40: #{tpu_custom_call.1} parent=35 // pred_fallthru
          _
      $region36: #{tpu_custom_call.1} parent=5 // pred_fallthru
        _
    $region6: #{tpu_custom_call.1} parent=1 // loop_footer
      %s17 = sadd.s32 1, %s13
    $region7: #{tpu_custom_call.1} parent=1 // loop_footer_branch
      %12 = sbr.rel target = $region3
    $region8: #{tpu_custom_call.1} parent=1 // loop_exit
      _
    %210 = vsyncpa [#allocation3], 1
    %s211 = scalar_lea.sflag [#allocation3], 1
    %212 = vsyncpa %s211, 1
    %213 = vsyncpa [#allocation4], 1
    %s214 = scalar_lea.sflag [#allocation4], 1
    %215 = vsyncpa %s214, 1

</llo_original>
